<compile_context>
chip_gen: v7x
topology: tpu7x:2x2x1
jax: 0.10.0
libtpu: 0.0.40
codegen_flags: <defaults>
</compile_context>

<pallas_src>
import functools

import jax
import jax.numpy as jnp
from jax import lax
from jax.experimental import pallas as pl
from jax.experimental.pallas import tpu as pltpu


# --------------------------------------------------------------------------------------
# small helpers
# --------------------------------------------------------------------------------------
def _pair(v):
    if isinstance(v, (tuple, list)):
        assert len(v) == 2
        return tuple(v)
    return (v, v)


def _quadruple(v):
    if isinstance(v, (tuple, list)):
        assert len(v) == 4
        return tuple(v)
    return (v, v, v, v)


def _round_up(a, b):
    return -(-a // b) * b


# --------------------------------------------------------------------------------------
# compare-exchange networks (built in Python at trace time)
# --------------------------------------------------------------------------------------
def _truncated_bubble_pairs(n, m):
    """Bubble sort truncated to the passes that settle ascending indices m..n-1."""
    pairs = []
    for i in range(n - m):
        for j in range(n - 1 - i):
            pairs.append((j, j + 1))
    return pairs


def _batcher_pairs_pow2(p):
    """Batcher odd-even mergesort comparator list for p wires (p = power of two)."""
    pairs = []

    def merge(lo, hi, r):
        step = r * 2
        if step < hi - lo:
            merge(lo, hi, step)
            merge(lo + r, hi, step)
            pairs.extend((i, i + r) for i in range(lo + r, hi - r, step))
        else:
            pairs.append((lo, lo + r))

    def sort(lo, hi):
        if hi - lo >= 1:
            mid = lo + (hi - lo) // 2
            sort(lo, mid)
            sort(mid + 1, hi)
            merge(lo, hi, 1)

    if p > 1:
        sort(0, p - 1)
    return pairs


def _pruned_selection_pairs(n, m):
    """Comparator network placing the rank-m (ascending) element on wire m.

    Built from a Batcher sort padded with virtual +inf wires (comparators touching a
    virtual wire are identities on real wires and are dropped), then backward-pruned
    to the comparators that can influence wire m."""
    p = 1
    while p < n:
        p *= 2
    pairs = [(i, j) for (i, j) in _batcher_pairs_pow2(p) if j < n]
    needed = {m}
    kept = []
    for (i, j) in reversed(pairs):
        if i in needed or j in needed:
            kept.append((i, j))
            needed.add(i)
            needed.add(j)
    kept.reverse()
    return kept


def _network_selects_median(pairs, n, m, trials=400):
    """Numeric smoke-test of the comparator network (includes 0/1 stress vectors)."""
    import random
    rng = random.Random(0)
    for t in range(trials):
        if t % 2:
            vals = [rng.randint(0, 1) for _ in range(n)]
        else:
            vals = [rng.randint(0, n // 2 + 1) for _ in range(n)]
        w = list(vals)
        for (i, j) in pairs:
            if w[i] > w[j]:
                w[i], w[j] = w[j], w[i]
        if w[m] != sorted(vals)[m]:
            return False
    return True


@functools.lru_cache(maxsize=None)
def _median_network(n):
    """(pairs, med_idx): smallest verified compare-exchange network for the lower median."""
    m = (n - 1) // 2
    if n == 1:
        return (), 0
    best = _truncated_bubble_pairs(n, m)          # known-correct fallback
    sel = _pruned_selection_pairs(n, m)
    if len(sel) < len(best) and _network_selects_median(sel, n, m):
        best = sel
    return tuple(best), m


# --------------------------------------------------------------------------------------
# elementwise min/max building blocks (run on the VPU inside the kernel)
# --------------------------------------------------------------------------------------
def _cmpswap(a, b):
    return jnp.minimum(a, b), jnp.maximum(a, b)


def _sort3(a, b, c):
    a, b = _cmpswap(a, b)
    b, c = _cmpswap(b, c)
    a, b = _cmpswap(a, b)
    return a, b, c                                  # ascending


def _med3(a, b, c):
    lo, hi = _cmpswap(a, b)
    return jnp.maximum(lo, jnp.minimum(hi, c))


def _min3(a, b, c):
    return jnp.minimum(a, jnp.minimum(b, c))


def _max3(a, b, c):
    return jnp.maximum(a, jnp.maximum(b, c))


def _apply_network(vals, pairs, m):
    w = list(vals)
    for (i, j) in pairs:
        w[i], w[j] = _cmpswap(w[i], w[j])
    return w[m]


# --------------------------------------------------------------------------------------
# pltpu.roll rotation-convention probe (run once; falls back to slicing if unusable)
# --------------------------------------------------------------------------------------
@functools.lru_cache(maxsize=None)
def _roll_sign():
    """+1 if pltpu.roll matches jnp.roll, -1 for the opposite rotation, None if unusable."""
    try:
        lane = jnp.tile(jnp.arange(260, dtype=jnp.float32)[None, None, :], (3, 10, 1))
        sub = jnp.tile(jnp.arange(10, dtype=jnp.float32)[None, :, None], (3, 1, 260))

        def probe(a_ref, b_ref, oa_ref, ob_ref):
            oa_ref[...] = pltpu.roll(a_ref[...], 1, 2)   # lane-axis rotate
            ob_ref[...] = pltpu.roll(b_ref[...], 1, 1)   # sublane-axis rotate

        oa, ob = pl.pallas_call(
            probe,
            out_shape=(jax.ShapeDtypeStruct(lane.shape, lane.dtype),
                       jax.ShapeDtypeStruct(sub.shape, sub.dtype)),
        )(lane, sub)
        oa = jax.device_get(oa)
        ob = jax.device_get(ob)
        if (oa[0, 0, 0] == 259.0 and oa[0, 0, 1] == 0.0
                and ob[0, 0, 0] == 9.0 and ob[0, 1, 0] == 0.0):
            return 1
        if (oa[0, 0, 0] == 1.0 and oa[0, 0, 1] == 2.0
                and ob[0, 0, 0] == 1.0 and ob[0, 1, 0] == 2.0):
            return -1
    except Exception:
        pass
    return None


# --------------------------------------------------------------------------------------
# kernel factory
# --------------------------------------------------------------------------------------
def _make_kernel(*, layout, kh, kw, sh, sw, th, ow, net_pairs, med_idx, roll_sign):
    """Build the Pallas kernel body.

    Blocks seen by the kernel:
      layout == "w_last":  y_ref (1, n_phase, B, TH_in, Wd),  o_ref (1, B, TH, ow)
                           (sublanes = image rows, lanes = image width)
      layout == "nc_last": y_ref (1, n_phase, TH_in, Wd, B),  o_ref (1, TH, ow, B)
                           (sublanes = image width, lanes = flattened N*C)
    Vertical window offsets are outer-dim / row selections; horizontal offsets are
    pltpu.roll of full-width planes (XLU) when available, else static slices.  Only
    the final store crops to the valid (TH, ow) region.
    """
    nc_last = layout == "nc_last"
    use_roll = roll_sign is not None

    def kernel(y_ref, o_ref):
        loaded = {}
        vcache = {}

        def full_plane(p):
            if p not in loaded:
                loaded[p] = y_ref[0, p]
            return loaded[p]

        def rolled(a, off, axis):
            # result[i] = a[(i + off) mod size] along `axis`
            if off == 0:
                return a
            axis = axis % a.ndim
            size = a.shape[axis]
            shift = (size - off) % size if roll_sign > 0 else off % size
            return pltpu.roll(a, shift, axis)

        def vplane(p, r0):
            key = (p, r0)
            if key in vcache:
                return vcache[key]
            if nc_last:
                v = y_ref[0, p, r0:r0 + th, :, :]            # (TH, Wd, B): free row select
            elif use_roll:
                v = rolled(full_plane(p), r0, 1)             # (B, TH_in, Wd): sublane roll
            else:
                v = y_ref[0, p, :, r0:r0 + th, :]            # (B, TH, Wd)
            vcache[key] = v
            return v

        w_axis = 1 if nc_last else 2                         # axis holding image width

        def hshift(a, c0):
            if use_roll:
                return rolled(a, c0, w_axis)
            idx = [slice(None)] * a.ndim
            idx[w_axis] = slice(c0, c0 + ow)
            return a[tuple(idx)]

        def crop(a):
            if nc_last:
                return a[:, :ow, :]
            return a[:, :th, :ow]

        if kh == 3 and kw == 3:
            # Shared-column median-of-9: each vertical triple is sorted once and reused
            # by all horizontal offsets that share its column phase, then
            #   med9 = med3(max3(column mins), med3(column medians), min3(column maxs)).
            cols = {}
            for q in sorted({dx % sw for dx in range(3)}):
                trip = [vplane((dy % sh) * sw + q, dy // sh) for dy in range(3)]
                cols[q] = _sort3(*trip)
            lo3, mid3, hi3 = [], [], []
            for dx in range(3):
                cmin, cmed, cmax = cols[dx % sw]
                t = dx // sw
                lo3.append(hshift(cmin, t))
                mid3.append(hshift(cmed, t))
                hi3.append(hshift(cmax, t))
            med = _med3(_max3(*lo3), _med3(*mid3), _min3(*hi3))
        else:
            vals = []
            for dy in range(kh):
                for dx in range(kw):
                    p = (dy % sh) * sw + (dx % sw)
                    vals.append(hshift(vplane(p, dy // sh), dx // sw))
            med = _apply_network(vals, net_pairs, med_idx)

        o_ref[0] = crop(med).astype(o_ref.dtype)

    return kernel


# --------------------------------------------------------------------------------------
# block / band planning (generation-aware VMEM sizing)
# --------------------------------------------------------------------------------------
def _vmem_limit_bytes():
    phys = None
    try:
        info = pltpu.get_tpu_info()
        phys = getattr(info, "vmem_capacity_bytes", None)
    except Exception:
        phys = None
    if not phys:
        phys = 64 << 20              # conservative default: v7x has 64 MiB per TensorCore
    return int(min(phys * 5 // 8, 100 << 20))


def _plan_blocks(layout, nc, n_phase, wd, oh, ow, halo, itemsize, live_planes,
                 force_band_rows):
    """Pick (B images per block, TH output rows per band, nT bands, n NC-blocks, limit)."""
    unit = 128 if layout == "nc_last" else 1
    nc_padded = _round_up(nc, unit)
    limit = _vmem_limit_bytes()
    budget = limit // 2              # headroom for double buffering / compiler temporaries

    def step_bytes(b, t):
        tin = t + halo
        in_b = n_phase * tin * wd * b * itemsize
        out_b = t * ow * b * itemsize
        tmp_b = live_planes * tin * wd * b * itemsize
        return 2 * in_b + 2 * out_b + tmp_b

    if force_band_rows is not None:
        th = max(1, min(int(force_band_rows), oh))
    else:
        th = oh
        while th > 8 and step_bytes(unit, th) > budget:      # H-band tiling for big images
            th = max(8, (th + 1) // 2)
        while th > 1 and step_bytes(unit, th) > budget:
            th = max(1, th // 2)

    b = unit
    while b * 2 <= nc_padded and step_bytes(b * 2, th) <= budget:
        b *= 2
    if step_bytes(nc_padded, th) <= budget:
        b = nc_padded
    b = min(b, nc_padded)

    n_t = -(-oh // th)
    n_blk = -(-nc_padded // b)
    # v7x has two TensorCores: give the parallel grid >= 2 blocks when cheaply possible.
    if n_t * n_blk == 1 and nc_padded >= 2 * unit:
        b = _round_up(-(-nc_padded // 2), unit)
    if layout == "nc_last":                                   # keep lane blocks dividing NCp
        while nc_padded % b:
            b -= unit
        b = max(b, unit)
    b = min(b, nc_padded)
    n_blk = -(-nc_padded // b)
    return b, th, n_t, n_blk, limit


# --------------------------------------------------------------------------------------
# forward pass (jitted; all planning is static)
# --------------------------------------------------------------------------------------
@functools.partial(jax.jit, static_argnums=(1, 2, 3, 4, 5, 6))
def _median_pool_forward(x, k, stride, padding, same, force_band_rows, roll_sign):
    kh, kw = k
    sh, sw = stride
    N, C, H, W = x.shape

    # ---- reflect padding (torch F.pad semantics) ------------------------------------
    if same:
        ph = max(kh - sh, 0) if H % sh == 0 else max(kh - H % sh, 0)
        pw = max(kw - sw, 0) if W % sw == 0 else max(kw - W % sw, 0)
        p_l, p_t = pw // 2, ph // 2
        p_r, p_b = pw - p_l, ph - p_t
    else:
        p_l, p_r, p_t, p_b = padding
    if any(p > 0 for p in (p_l, p_r, p_t, p_b)):
        if max(p_l, p_r) >= W or max(p_t, p_b) >= H:
            raise ValueError("reflect padding must be smaller than the padded dimension")
        x = jnp.pad(x, ((0, 0), (0, 0), (p_t, p_b), (p_l, p_r)), mode="reflect")

    N, C, Hp, Wp = x.shape
    oh = (Hp - kh) // sh + 1
    ow = (Wp - kw) // sw + 1
    if oh <= 0 or ow <= 0:
        raise ValueError("kernel does not fit in the (padded) input")
    NC = N * C
    n_phase = sh * sw
    halo = (kh - 1) // sh
    Hd = oh + halo
    Wd = ow + (kw - 1) // sw
    itemsize = jnp.dtype(x.dtype).itemsize

    # ---- static planning -------------------------------------------------------------
    layout = "nc_last" if (NC >= 128 and ow <= 64) else "w_last"
    if kh == 3 and kw == 3:
        net_pairs, med_idx, n_cmp = (), 0, 9
    else:
        net_pairs, med_idx = _median_network(kh * kw)
        n_cmp = max(len(net_pairs), 1)
    live = (n_phase + 8) if (kh == 3 and kw == 3) else (kh * kw + n_phase + 4)
    B, TH, nT, nblk, vmem_limit = _plan_blocks(
        layout, NC, n_phase, Wd, oh, ow, halo, itemsize, live, force_band_rows)
    TH_in = TH + halo

    # ---- phase decomposition: y[p, nc, i, j] = xpad[nc, i*sh + p//sw, j*sw + p%sw] ----
    x_flat = x.reshape(NC, Hp, Wp)
    if n_phase == 1:
        y = x_flat[None]                              # stride 1: free, no extra HBM pass
    else:
        need_h, need_w = Hd * sh, Wd * sw
        x2 = x_flat[:, :min(Hp, need_h), :min(Wp, need_w)]
        pad_h, pad_w = need_h - x2.shape[1], need_w - x2.shape[2]
        if pad_h or pad_w:
            x2 = jnp.pad(x2, ((0, 0), (0, pad_h), (0, pad_w)))   # never read for valid outputs
        y = (x2.reshape(NC, Hd, sh, Wd, sw)
               .transpose(2, 4, 0, 1, 3)
               .reshape(n_phase, NC, Hd, Wd))

    # ---- internal layout --------------------------------------------------------------
    if layout == "nc_last":
        NCi = _round_up(NC, 128)
        y = jnp.transpose(y, (0, 2, 3, 1))            # (n_phase, Hd, Wd, NC): NC on lanes
        if NCi != NC:
            y = jnp.pad(y, ((0, 0), (0, 0), (0, 0), (0, NCi - NC)))
        h_axis = 1
    else:
        NCi = NC
        h_axis = 2

    # ---- optional H-band tiling (bounds per-step VMEM for large images) ----------------
    if nT == 1:
        y_in = y[None]
    else:
        need = nT * TH + halo
        pad_rows = need - y.shape[h_axis]
        if pad_rows > 0:
            pads = [(0, 0)] * y.ndim
            pads[h_axis] = (0, pad_rows)
            y = jnp.pad(y, pads)
        y_in = jnp.stack(
            [lax.slice_in_dim(y, t * TH, t * TH + TH_in, axis=h_axis) for t in range(nT)],
            axis=0)

    # ---- pallas call --------------------------------------------------------------------
    if layout == "nc_last":
        in_spec = pl.BlockSpec((1, n_phase, TH_in, Wd, B), lambda t, i: (t, 0, 0, 0, i))
        out_spec = pl.BlockSpec((1, TH, ow, B), lambda t, i: (t, 0, 0, i))
        out_sds = jax.ShapeDtypeStruct((nT, TH, ow, NCi), x.dtype)
    else:
        in_spec = pl.BlockSpec((1, n_phase, B, TH_in, Wd), lambda t, i: (t, 0, i, 0, 0))
        out_spec = pl.BlockSpec((1, B, TH, ow), lambda t, i: (t, i, 0, 0))
        out_sds = jax.ShapeDtypeStruct((nT, NCi, TH, ow), x.dtype)

    kernel = _make_kernel(layout=layout, kh=kh, kw=kw, sh=sh, sw=sw, th=TH, ow=ow,
                          net_pairs=net_pairs, med_idx=med_idx, roll_sign=roll_sign)

    cost = pl.CostEstimate(
        flops=2 * n_cmp * NCi * oh * ow,
        transcendentals=0,
        bytes_accessed=int(y_in.size) * itemsize + NCi * oh * ow * itemsize)

    out = pl.pallas_call(
        kernel,
        out_shape=out_sds,
        grid=(nT, nblk),
        in_specs=[in_spec],
        out_specs=out_spec,
        compiler_params=pltpu.CompilerParams(
            dimension_semantics=("parallel", "parallel"),
            vmem_limit_bytes=vmem_limit),
        cost_estimate=cost,
    )(y_in)

    # ---- back to NCHW -------------------------------------------------------------------
    if layout == "nc_last":
        out = jnp.transpose(out, (3, 0, 1, 2)).reshape(NCi, nT * TH, ow)
    else:
        out = jnp.transpose(out, (1, 0, 2, 3)).reshape(NCi, nT * TH, ow)
    out = out[:NC, :oh, :]
    return out.reshape(N, C, oh, ow)


# --------------------------------------------------------------------------------------
# public module
# --------------------------------------------------------------------------------------
class MedianPool2d:
    """Median pool / median filter, matching the PyTorch module's forward.

    NOTE: min/max networks propagate NaNs differently from torch.sort (which orders
    NaNs last); outputs match torch exactly for NaN-free inputs."""

    def __init__(self, kernel_size=3, stride=1, padding=0, same=False,
                 *, _force_band_rows=None):
        self.k = _pair(kernel_size)
        self.stride = _pair(stride)
        self.padding = _quadruple(padding)      # (l, r, t, b) as in F.pad
        self.same = same
        self._force_band_rows = _force_band_rows

    def _padding_amounts(self, x):
        if self.same:
            ih, iw = x.shape[2], x.shape[3]
            if ih % self.stride[0] == 0:
                ph = max(self.k[0] - self.stride[0], 0)
            else:
                ph = max(self.k[0] - ih % self.stride[0], 0)
            if iw % self.stride[1] == 0:
                pw = max(self.k[1] - self.stride[1], 0)
            else:
                pw = max(self.k[1] - iw % self.stride[1], 0)
            p_l = pw // 2
            p_r = pw - p_l
            p_t = ph // 2
            p_b = ph - p_t
            return (p_l, p_r, p_t, p_b)
        return self.padding

    def __call__(self, x):
        # pltpu.roll is used only for 32-bit dtypes; packed dtypes fall back to slicing.
        sign = _roll_sign() if jnp.dtype(x.dtype).itemsize == 4 else None
        return _median_pool_forward(x, self.k, self.stride, self.padding, self.same,
                                    self._force_band_rows, sign)


# --------------------------------------------------------------------------------------
# pure-JAX reference (mirrors the torch forward; lower median)
# --------------------------------------------------------------------------------------
def _reference_median_pool(x, k, stride, padding, same):
    mod = MedianPool2d(k, stride, padding, same)
    p_l, p_r, p_t, p_b = mod._padding_amounts(x)
    if any(p > 0 for p in (p_l, p_r, p_t, p_b)):
        x = jnp.pad(x, ((0, 0), (0, 0), (p_t, p_b), (p_l, p_r)), mode="reflect")
    N, C, Hp, Wp = x.shape
    kh, kw = mod.k
    sh, sw = mod.stride
    oh = (Hp - kh) // sh + 1
    ow = (Wp - kw) // sw + 1
    windows = []
    for dy in range(kh):
        for dx in range(kw):
            windows.append(
                x[:, :, dy: dy + (oh - 1) * sh + 1: sh,
                        dx: dx + (ow - 1) * sw + 1: sw])
    stacked = jnp.stack(windows, axis=-1)
    srt = jnp.sort(stacked, axis=-1)
    return srt[..., (kh * kw - 1) // 2]


if __name__ == "__main__":
    key = jax.random.PRNGKey(0)
    k1, k2 = jax.random.split(key)
    x_small = jax.random.normal(k1, (2, 4, 16, 16), dtype=jnp.float32)
    x_many = jax.random.normal(k2, (2, 64, 16, 16), dtype=jnp.float32)   # NC=128 -> NC-last layout
    x_bf16 = x_small.astype(jnp.bfloat16)

    cases = [
        # (input, ctor kwargs, expected output shape)
        (x_small, dict(kernel_size=3, stride=1, padding=0, same=False), (2, 4, 14, 14)),
        (x_small, dict(kernel_size=3, stride=1, padding=0, same=True), (2, 4, 16, 16)),
        (x_small, dict(kernel_size=5, stride=2, padding=2, same=False), (2, 4, 8, 8)),
        # forced H-band tiling (exercises the halo/band path used for large images)
        (x_small, dict(kernel_size=3, stride=1, padding=0, same=True,
                       _force_band_rows=4), (2, 4, 16, 16)),
        (x_small, dict(kernel_size=5, stride=2, padding=2, same=False,
                       _force_band_rows=4), (2, 4, 8, 8)),
        # lane-dense NC-last layout (NC >= 128), with and without banding
        (x_many, dict(kernel_size=3, stride=1, padding=0, same=False), (2, 64, 14, 14)),
        (x_many, dict(kernel_size=3, stride=1, padding=0, same=False,
                      _force_band_rows=4), (2, 64, 14, 14)),
        # bf16 stays bf16 in-kernel (no promotion)
        (x_bf16, dict(kernel_size=3, stride=1, padding=0, same=True), (2, 4, 16, 16)),
    ]

    for xin, cfg, exp_shape in cases:
        pool = MedianPool2d(**cfg)
        out = jax.block_until_ready(pool(xin))
        ref_cfg = {kk: vv for kk, vv in cfg.items() if not kk.startswith("_")}
        ref = _reference_median_pool(xin,
                                     ref_cfg.get("kernel_size", 3),
                                     ref_cfg.get("stride", 1),
                                     ref_cfg.get("padding", 0),
                                     ref_cfg.get("same", False))
        assert out.shape == exp_shape, (cfg, out.shape, exp_shape)
        assert out.dtype == xin.dtype, (cfg, out.dtype, xin.dtype)
        assert jnp.array_equal(out, ref), f"mismatch vs reference for {cfg}"

    print("KERNEL_OK")
</pallas_src>

<mosaic_0001>
module attributes {stable_mosaic.version = 11 : i64} {
  func.func @probe(%arg0: memref<3x10x260xf32, #tpu.memory_space<vmem>>, %arg1: memref<3x10x260xf32, #tpu.memory_space<vmem>>, %arg2: memref<3x10x260xf32, #tpu.memory_space<vmem>>, %arg3: memref<3x10x260xf32, #tpu.memory_space<vmem>>) attributes {dimension_semantics = [], scalar_prefetch = 0 : i64, scratch_operands = 0 : i64, tpu.core_type = #tpu.core_type<tc>} {
    %c0 = arith.constant 0 : index
    %c0_0 = arith.constant 0 : index
    %c0_1 = arith.constant 0 : index
    %0 = vector.load %arg0[%c0, %c0_0, %c0_1] : memref<3x10x260xf32, #tpu.memory_space<vmem>>, vector<3x10x260xf32>
    %c1_i32 = arith.constant 1 : i32
    %1 = tpu.dynamic_rotate %0 by %c1_i32 dim 2 : vector<3x10x260xf32>, i32 -> vector<3x10x260xf32>
    %c0_2 = arith.constant 0 : index
    %c0_3 = arith.constant 0 : index
    %c0_4 = arith.constant 0 : index
    %2 = vector.load %arg2[%c0_2, %c0_3, %c0_4] : memref<3x10x260xf32, #tpu.memory_space<vmem>>, vector<3x10x260xf32>
    tpu.vector_store %arg2[%c0_2, %c0_3, %c0_4], %1 {strides = array<i32>} : memref<3x10x260xf32, #tpu.memory_space<vmem>>, vector<3x10x260xf32>,
    %c0_5 = arith.constant 0 : index
    %c0_6 = arith.constant 0 : index
    %c0_7 = arith.constant 0 : index
    %3 = vector.load %arg1[%c0_5, %c0_6, %c0_7] : memref<3x10x260xf32, #tpu.memory_space<vmem>>, vector<3x10x260xf32>
    %c1_i32_8 = arith.constant 1 : i32
    %4 = tpu.dynamic_rotate %3 by %c1_i32_8 dim 1 : vector<3x10x260xf32>, i32 -> vector<3x10x260xf32>
    %c0_9 = arith.constant 0 : index
    %c0_10 = arith.constant 0 : index
    %c0_11 = arith.constant 0 : index
    %5 = vector.load %arg3[%c0_9, %c0_10, %c0_11] : memref<3x10x260xf32, #tpu.memory_space<vmem>>, vector<3x10x260xf32>
    tpu.vector_store %arg3[%c0_9, %c0_10, %c0_11], %4 {strides = array<i32>} : memref<3x10x260xf32, #tpu.memory_space<vmem>>, vector<3x10x260xf32>,
    return
  }
}

module attributes {stable_mosaic.version = 11 : i64} {
  func.func @kernel(%arg0: i32, %arg1: i32, %arg2: memref<1x1x4x16x16xf32, #tpu.memory_space<vmem>>, %arg3: memref<1x4x14x14xf32, #tpu.memory_space<vmem>>) attributes {dimension_semantics = [#tpu.dimension_semantics<parallel>, #tpu.dimension_semantics<parallel>], iteration_bounds = array<i64: 1, 2>, scalar_prefetch = 0 : i64, scratch_operands = 0 : i64, tpu.core_type = #tpu.core_type<tc>, window_params = [{transform_indices = @transform_0, window_bounds = array<i64: 1, 1, 4, 16, 16>}, {transform_indices = @transform_1, window_bounds = array<i64: 1, 4, 14, 14>}]} {
    %c0 = arith.constant 0 : index
    %c0_0 = arith.constant 0 : index
    %c0_1 = arith.constant 0 : index
    %c0_2 = arith.constant 0 : index
    %c0_3 = arith.constant 0 : index
    %0 = vector.load %arg2[%c0, %c0_0, %c0_1, %c0_2, %c0_3] : memref<1x1x4x16x16xf32, #tpu.memory_space<vmem>>, vector<1x1x4x14x16xf32>
    %1 = vector.shape_cast %0 : vector<1x1x4x14x16xf32> to vector<4x14x16xf32>
    %c0_4 = arith.constant 0 : index
    %c0_5 = arith.constant 0 : index
    %c0_6 = arith.constant 0 : index
    %c1 = arith.constant 1 : index
    %c0_7 = arith.constant 0 : index
    %2 = vector.load %arg2[%c0_4, %c0_5, %c0_6, %c1, %c0_7] : memref<1x1x4x16x16xf32, #tpu.memory_space<vmem>>, vector<1x1x4x14x16xf32>
    %3 = vector.shape_cast %2 : vector<1x1x4x14x16xf32> to vector<4x14x16xf32>
    %c0_8 = arith.constant 0 : index
    %c0_9 = arith.constant 0 : index
    %c0_10 = arith.constant 0 : index
    %c2 = arith.constant 2 : index
    %c0_11 = arith.constant 0 : index
    %4 = vector.load %arg2[%c0_8, %c0_9, %c0_10, %c2, %c0_11] : memref<1x1x4x16x16xf32, #tpu.memory_space<vmem>>, vector<1x1x4x14x16xf32>
    %5 = vector.shape_cast %4 : vector<1x1x4x14x16xf32> to vector<4x14x16xf32>
    %6 = arith.minimumf %1, %3 : vector<4x14x16xf32>
    %7 = arith.maximumf %1, %3 : vector<4x14x16xf32>
    %8 = arith.minimumf %7, %5 : vector<4x14x16xf32>
    %9 = arith.maximumf %7, %5 : vector<4x14x16xf32>
    %10 = arith.minimumf %6, %8 : vector<4x14x16xf32>
    %11 = arith.maximumf %6, %8 : vector<4x14x16xf32>
    %12 = vector.extract_strided_slice %10 {offsets = [0, 0, 0], sizes = [4, 14, 14], strides = [1, 1, 1]} : vector<4x14x16xf32> to vector<4x14x14xf32>
    %13 = vector.extract_strided_slice %11 {offsets = [0, 0, 0], sizes = [4, 14, 14], strides = [1, 1, 1]} : vector<4x14x16xf32> to vector<4x14x14xf32>
    %14 = vector.extract_strided_slice %9 {offsets = [0, 0, 0], sizes = [4, 14, 14], strides = [1, 1, 1]} : vector<4x14x16xf32> to vector<4x14x14xf32>
    %15 = vector.extract_strided_slice %10 {offsets = [0, 0, 1], sizes = [4, 14, 14], strides = [1, 1, 1]} : vector<4x14x16xf32> to vector<4x14x14xf32>
    %16 = vector.extract_strided_slice %11 {offsets = [0, 0, 1], sizes = [4, 14, 14], strides = [1, 1, 1]} : vector<4x14x16xf32> to vector<4x14x14xf32>
    %17 = vector.extract_strided_slice %9 {offsets = [0, 0, 1], sizes = [4, 14, 14], strides = [1, 1, 1]} : vector<4x14x16xf32> to vector<4x14x14xf32>
    %18 = vector.extract_strided_slice %10 {offsets = [0, 0, 2], sizes = [4, 14, 14], strides = [1, 1, 1]} : vector<4x14x16xf32> to vector<4x14x14xf32>
    %19 = vector.extract_strided_slice %11 {offsets = [0, 0, 2], sizes = [4, 14, 14], strides = [1, 1, 1]} : vector<4x14x16xf32> to vector<4x14x14xf32>
    %20 = vector.extract_strided_slice %9 {offsets = [0, 0, 2], sizes = [4, 14, 14], strides = [1, 1, 1]} : vector<4x14x16xf32> to vector<4x14x14xf32>
    %21 = arith.maximumf %15, %18 : vector<4x14x14xf32>
    %22 = arith.maximumf %12, %21 : vector<4x14x14xf32>
    %23 = arith.minimumf %13, %16 : vector<4x14x14xf32>
    %24 = arith.maximumf %13, %16 : vector<4x14x14xf32>
    %25 = arith.minimumf %24, %19 : vector<4x14x14xf32>
    %26 = arith.maximumf %23, %25 : vector<4x14x14xf32>
    %27 = arith.minimumf %17, %20 : vector<4x14x14xf32>
    %28 = arith.minimumf %14, %27 : vector<4x14x14xf32>
    %29 = arith.minimumf %22, %26 : vector<4x14x14xf32>
    %30 = arith.maximumf %22, %26 : vector<4x14x14xf32>
    %31 = arith.minimumf %30, %28 : vector<4x14x14xf32>
    %32 = arith.maximumf %29, %31 : vector<4x14x14xf32>
    %c0_12 = arith.constant 0 : index
    %c0_13 = arith.constant 0 : index
    %c0_14 = arith.constant 0 : index
    %c0_15 = arith.constant 0 : index
    %33 = vector.load %arg3[%c0_12, %c0_13, %c0_14, %c0_15] : memref<1x4x14x14xf32, #tpu.memory_space<vmem>>, vector<1x4x14x14xf32>
    %34 = vector.shape_cast %33 : vector<1x4x14x14xf32> to vector<4x14x14xf32>
    %35 = vector.shape_cast %32 : vector<4x14x14xf32> to vector<1x4x14x14xf32>
    tpu.vector_store %arg3[%c0_12, %c0_13, %c0_14, %c0_15], %35 {strides = array<i32>} : memref<1x4x14x14xf32, #tpu.memory_space<vmem>>, vector<1x4x14x14xf32>,
    return
  }
  func.func @transform_0(%arg0: i32, %arg1: i32) -> (i32, i32, i32, i32, i32) {
    %c0_i32 = arith.constant 0 : i32
    %c0_i32_0 = arith.constant 0 : i32
    %c0_i32_1 = arith.constant 0 : i32
    %c0_i32_2 = arith.constant 0 : i32
    return %arg0, %c0_i32, %arg1, %c0_i32_0, %c0_i32_1 : i32, i32, i32, i32, i32
  }
  func.func @transform_1(%arg0: i32, %arg1: i32) -> (i32, i32, i32, i32) {
    %c0_i32 = arith.constant 0 : i32
    %c0_i32_0 = arith.constant 0 : i32
    %c0_i32_1 = arith.constant 0 : i32
    return %arg0, %arg1, %c0_i32, %c0_i32_0 : i32, i32, i32, i32
  }
}

</mosaic_0001>

<llo_original>
// kernel: tpu_custom_call.1
$region0: #{tpu_custom_call.1}
  #allocation0 [shape = 'u32[]', space=smem, size = 0x4, offset = 0x4, fixed_abs, tag = 'smem constant byte address 0x4 - core index']
  #allocation1 [shape = 'u32[144,128]{1,0:T(1,128)}', space=vmem, size = 0x12000, scoped, tag = 'internal scratch']
  %s0 = inlined_call_operand.vmem [shape: f32[3,10,260], index: 0, kind: input, shape index: {}]
  %s1 = inlined_call_operand.vmem [shape: f32[3,10,260], index: 1, kind: input, shape index: {}]
  %s2 = inlined_call_operand.vmem [shape: f32[3,10,260], index: 2, kind: output, shape index: {0}]
  %s3 = inlined_call_operand.vmem [shape: f32[3,10,260], index: 3, kind: output, shape index: {1}]
  %4 = xla_tuple %s2, %s3
  %s5 = sld [smem:[#allocation0]]
  $region26: #{tpu_custom_call.1} parent=0
    _
  %s7 = ssub.s32 1, %s5
  %s8 = scalar_select 0, %s7, %s5
  // Predicated region
  $region2: #{tpu_custom_call.1} parent=0 // pred_check
    _
  $region3: #{tpu_custom_call.1} parent=0 // pred_check_branch
    %10 = sbr.rel (0) target = $region5
  $region4: #{tpu_custom_call.1} parent=0 // pred_region
    _
  $region5: #{tpu_custom_call.1} parent=0 // pred_fallthru
    _
  // Predicated region
  $region6: #{tpu_custom_call.1} parent=0 // pred_check
    _
  $region7: #{tpu_custom_call.1} parent=0 // pred_check_branch
    %12 = sbr.rel (0) target = $region9
  $region8: #{tpu_custom_call.1} parent=0 // pred_region
    _
  $region9: #{tpu_custom_call.1} parent=0 // pred_fallthru
    _
  %v13 = vld [vmem:[%s0] sm:$0xff]
  %v14 = vld [vmem:[%s0 + $0x8] sm:$0xff]
  %v15 = vld [vmem:[%s0 + $0x10] sm:$0xff]
  %v16 = vld [vmem:[%s0 + $0x18] sm:$0x3]
  %v17 = vld [vmem:[%s0 + $0x20] sm:$0x3]
  %v18 = vld [vmem:[%s0 + $0x28] sm:$0x3]
  %v19 = vld [vmem:[%s0 + $0x30] sm:$0xff]
  %v20 = vld [vmem:[%s0 + $0x38] sm:$0xff]
  %v21 = vld [vmem:[%s0 + $0x40] sm:$0xff]
  %v22 = vld [vmem:[%s0 + $0x48] sm:$0x3]
  %v23 = vld [vmem:[%s0 + $0x50] sm:$0x3]
  %v24 = vld [vmem:[%s0 + $0x58] sm:$0x3]
  %v25 = vld [vmem:[%s0 + $0x60] sm:$0xff]
  %v26 = vld [vmem:[%s0 + $0x68] sm:$0xff]
  %v27 = vld [vmem:[%s0 + $0x70] sm:$0xff]
  %v28 = vld [vmem:[%s0 + $0x78] sm:$0x3]
  %v29 = vld [vmem:[%s0 + $0x80] sm:$0x3]
  %v30 = vld [vmem:[%s0 + $0x88] sm:$0x3]
  %vm31 = vcmask 1047584
  %32 = vrot.lane.b32.xlu0 %v13, 4
  %v33 = vpop.permute.xlu0 %32
  %v34 = vsel %vm31, %v33, %v15
  %35 = vrot.lane.b32.xlu0 %v16, 4
  %v36 = vpop.permute.xlu0 %35
  %v37 = vsel %vm31, %v36, %v18
  %38 = vrot.lane.b32.xlu0 %v19, 4
  %v39 = vpop.permute.xlu0 %38
  %v40 = vsel %vm31, %v39, %v21
  %41 = vrot.lane.b32.xlu0 %v22, 4
  %v42 = vpop.permute.xlu0 %41
  %v43 = vsel %vm31, %v42, %v24
  %44 = vrot.lane.b32.xlu0 %v25, 4
  %v45 = vpop.permute.xlu0 %44
  %v46 = vsel %vm31, %v45, %v27
  %47 = vrot.lane.b32.xlu0 %v28, 4
  %v48 = vpop.permute.xlu0 %47
  %v49 = vsel %vm31, %v48, %v30
  %50 = vrot.lane.b32.xlu0 %v14, 4
  %v51 = vpop.permute.xlu0 %50
  %52 = vrot.lane.b32.xlu0 %v17, 4
  %v53 = vpop.permute.xlu0 %52
  %54 = vrot.lane.b32.xlu0 %v20, 4
  %v55 = vpop.permute.xlu0 %54
  %56 = vrot.lane.b32.xlu0 %v23, 4
  %v57 = vpop.permute.xlu0 %56
  %58 = vrot.lane.b32.xlu0 %v26, 4
  %v59 = vpop.permute.xlu0 %58
  %60 = vrot.lane.b32.xlu0 %v29, 4
  %v61 = vpop.permute.xlu0 %60
  %62 = vrot.lane.b32.xlu0 %v34, 4
  %v63 = vpop.permute.xlu0 %62
  %64 = vrot.lane.b32.xlu0 %v37, 4
  %v65 = vpop.permute.xlu0 %64
  %66 = vrot.lane.b32.xlu0 %v40, 4
  %v67 = vpop.permute.xlu0 %66
  %68 = vrot.lane.b32.xlu0 %v43, 4
  %v69 = vpop.permute.xlu0 %68
  %70 = vrot.lane.b32.xlu0 %v46, 4
  %v71 = vpop.permute.xlu0 %70
  %72 = vrot.lane.b32.xlu0 %v49, 4
  %v73 = vpop.permute.xlu0 %72
  %v74 = vsel %vm31, %v51, %v33
  %v75 = vsel %vm31, %v53, %v36
  %v76 = vsel %vm31, %v55, %v39
  %v77 = vsel %vm31, %v57, %v42
  %v78 = vsel %vm31, %v59, %v45
  %v79 = vsel %vm31, %v61, %v48
  %v80 = vsel %vm31, %v63, %v51
  %v81 = vsel %vm31, %v65, %v53
  %v82 = vsel %vm31, %v67, %v55
  %v83 = vsel %vm31, %v69, %v57
  %v84 = vsel %vm31, %v71, %v59
  %v85 = vsel %vm31, %v73, %v61
  %104 = vrot.lane.b32.xlu0 %v34, 125
  %v105 = vpop.permute.xlu0 %104
  %106 = vrot.lane.b32.xlu0 %v74, 125
  %v107 = vpop.permute.xlu0 %106
  %108 = vrot.lane.b32.xlu0 %v80, 125
  %v109 = vpop.permute.xlu0 %108
  %110 = vrot.lane.b32.xlu0 %v37, 125
  %v111 = vpop.permute.xlu0 %110
  %112 = vrot.lane.b32.xlu0 %v75, 125
  %v113 = vpop.permute.xlu0 %112
  %114 = vrot.lane.b32.xlu0 %v81, 125
  %v115 = vpop.permute.xlu0 %114
  %116 = vrot.lane.b32.xlu0 %v40, 125
  %v117 = vpop.permute.xlu0 %116
  %118 = vrot.lane.b32.xlu0 %v76, 125
  %v119 = vpop.permute.xlu0 %118
  %120 = vrot.lane.b32.xlu0 %v82, 125
  %v121 = vpop.permute.xlu0 %120
  %122 = vrot.lane.b32.xlu0 %v43, 125
  %v123 = vpop.permute.xlu0 %122
  %124 = vrot.lane.b32.xlu0 %v77, 125
  %v125 = vpop.permute.xlu0 %124
  %126 = vrot.lane.b32.xlu0 %v83, 125
  %v127 = vpop.permute.xlu0 %126
  %128 = vrot.lane.b32.xlu0 %v46, 125
  %v129 = vpop.permute.xlu0 %128
  %130 = vrot.lane.b32.xlu0 %v78, 125
  %v131 = vpop.permute.xlu0 %130
  %132 = vrot.lane.b32.xlu0 %v84, 125
  %v133 = vpop.permute.xlu0 %132
  %134 = vrot.lane.b32.xlu0 %v49, 125
  %v135 = vpop.permute.xlu0 %134
  %136 = vrot.lane.b32.xlu0 %v79, 125
  %v137 = vpop.permute.xlu0 %136
  %138 = vrot.lane.b32.xlu0 %v85, 125
  %v139 = vpop.permute.xlu0 %138
  %vm140 = vcmask 1022976
  %v141 = vsel %vm140, %v105, %v107
  %v142 = vsel %vm140, %v107, %v109
  %v143 = vsel %vm140, %v111, %v113
  %v144 = vsel %vm140, %v113, %v115
  %v145 = vsel %vm140, %v117, %v119
  %v146 = vsel %vm140, %v119, %v121
  %v147 = vsel %vm140, %v123, %v125
  %v148 = vsel %vm140, %v125, %v127
  %v149 = vsel %vm140, %v129, %v131
  %v150 = vsel %vm140, %v131, %v133
  %v151 = vsel %vm140, %v135, %v137
  %v152 = vsel %vm140, %v137, %v139
  %171 = vst [vmem:[%s2] sm:$0xff] %v141
  %172 = vst [vmem:[%s2 + $0x8] sm:$0xff] %v142
  %vm173 = vcmask 31744
  %174 = vst.msk [vmem:[%s2 + $0x10] sm:$0xff] %vm173, %v109
  %175 = vst [vmem:[%s2 + $0x18] sm:$0x3] %v143
  %176 = vst [vmem:[%s2 + $0x20] sm:$0x3] %v144
  %vm177 = vcmask 25600
  %178 = vst.msk [vmem:[%s2 + $0x28] sm:$0x3] %vm177, %v115
  %179 = vst [vmem:[%s2 + $0x30] sm:$0xff] %v145
  %180 = vst [vmem:[%s2 + $0x38] sm:$0xff] %v146
  %181 = vst.msk [vmem:[%s2 + $0x40] sm:$0xff] %vm173, %v121
  %182 = vst [vmem:[%s2 + $0x48] sm:$0x3] %v147
  %183 = vst [vmem:[%s2 + $0x50] sm:$0x3] %v148
  %184 = vst.msk [vmem:[%s2 + $0x58] sm:$0x3] %vm177, %v127
  %185 = vst [vmem:[%s2 + $0x60] sm:$0xff] %v149
  %186 = vst [vmem:[%s2 + $0x68] sm:$0xff] %v150
  %187 = vst.msk [vmem:[%s2 + $0x70] sm:$0xff] %vm173, %v133
  %188 = vst [vmem:[%s2 + $0x78] sm:$0x3] %v151
  %189 = vst [vmem:[%s2 + $0x80] sm:$0x3] %v152
  %190 = vst.msk [vmem:[%s2 + $0x88] sm:$0x3] %vm177, %v139
  %v191 = vld [vmem:[%s1] sm:$0xff]
  %v192 = vld [vmem:[%s1 + $0x8] sm:$0xff]
  %v193 = vld [vmem:[%s1 + $0x10] sm:$0xff]
  %v194 = vld [vmem:[%s1 + $0x18] sm:$0x3]
  %v195 = vld [vmem:[%s1 + $0x20] sm:$0x3]
  %v196 = vld [vmem:[%s1 + $0x28] sm:$0x3]
  %v197 = vld [vmem:[%s1 + $0x30] sm:$0xff]
  %v198 = vld [vmem:[%s1 + $0x38] sm:$0xff]
  %v199 = vld [vmem:[%s1 + $0x40] sm:$0xff]
  %v200 = vld [vmem:[%s1 + $0x48] sm:$0x3]
  %v201 = vld [vmem:[%s1 + $0x50] sm:$0x3]
  %v202 = vld [vmem:[%s1 + $0x58] sm:$0x3]
  %v203 = vld [vmem:[%s1 + $0x60] sm:$0xff]
  %v204 = vld [vmem:[%s1 + $0x68] sm:$0xff]
  %v205 = vld [vmem:[%s1 + $0x70] sm:$0xff]
  %v206 = vld [vmem:[%s1 + $0x78] sm:$0x3]
  %v207 = vld [vmem:[%s1 + $0x80] sm:$0x3]
  %v208 = vld [vmem:[%s1 + $0x88] sm:$0x3]
  %vm209 = vcmask 1047554
  %v210 = vrot.slane %v191, 6
  %v211 = vsel %vm209, %v210, %v194
  %v212 = vrot.slane %v192, 6
  %v213 = vsel %vm209, %v212, %v195
  %v214 = vrot.slane %v193, 6
  %v215 = vsel %vm209, %v214, %v196
  %v216 = vrot.slane %v197, 6
  %v217 = vsel %vm209, %v216, %v200
  %v218 = vrot.slane %v198, 6
  %v219 = vsel %vm209, %v218, %v201
  %v220 = vrot.slane %v199, 6
  %v221 = vsel %vm209, %v220, %v202
  %v222 = vrot.slane %v203, 6
  %v223 = vsel %vm209, %v222, %v206
  %v224 = vrot.slane %v204, 6
  %v225 = vsel %vm209, %v224, %v207
  %v226 = vrot.slane %v205, 6
  %v227 = vsel %vm209, %v226, %v208
  %v228 = vrot.slane %v211, 6
  %v229 = vrot.slane %v213, 6
  %v230 = vrot.slane %v215, 6
  %v231 = vrot.slane %v217, 6
  %v232 = vrot.slane %v219, 6
  %v233 = vrot.slane %v221, 6
  %v234 = vrot.slane %v223, 6
  %v235 = vrot.slane %v225, 6
  %v236 = vrot.slane %v227, 6
  %v237 = vsel %vm209, %v228, %v210
  %v238 = vsel %vm209, %v229, %v212
  %v239 = vsel %vm209, %v230, %v214
  %v240 = vsel %vm209, %v231, %v216
  %v241 = vsel %vm209, %v232, %v218
  %v242 = vsel %vm209, %v233, %v220
  %v243 = vsel %vm209, %v234, %v222
  %v244 = vsel %vm209, %v235, %v224
  %v245 = vsel %vm209, %v236, %v226
  %vm264 = vcmask 1046528
  %v265 = vrot.slane %v211, 1
  %v266 = vrot.slane %v237, 1
  %v267 = vsel %vm264, %v265, %v266
  %v268 = vrot.slane %v213, 1
  %v269 = vrot.slane %v238, 1
  %v270 = vsel %vm264, %v268, %v269
  %v271 = vrot.slane %v215, 1
  %v272 = vrot.slane %v239, 1
  %v273 = vsel %vm264, %v271, %v272
  %v274 = vrot.slane %v217, 1
  %v275 = vrot.slane %v240, 1
  %v276 = vsel %vm264, %v274, %v275
  %v277 = vrot.slane %v219, 1
  %v278 = vrot.slane %v241, 1
  %v279 = vsel %vm264, %v277, %v278
  %v280 = vrot.slane %v221, 1
  %v281 = vrot.slane %v242, 1
  %v282 = vsel %vm264, %v280, %v281
  %v283 = vrot.slane %v223, 1
  %v284 = vrot.slane %v243, 1
  %v285 = vsel %vm264, %v283, %v284
  %v286 = vrot.slane %v225, 1
  %v287 = vrot.slane %v244, 1
  %v288 = vsel %vm264, %v286, %v287
  %v289 = vrot.slane %v227, 1
  %v290 = vrot.slane %v245, 1
  %v291 = vsel %vm264, %v289, %v290
  %310 = vst [vmem:[%s3] sm:$0xff] %v267
  %311 = vst [vmem:[%s3 + $0x8] sm:$0xff] %v270
  %312 = vst.msk [vmem:[%s3 + $0x10] sm:$0xff] %vm173, %v273
  %313 = vst [vmem:[%s3 + $0x18] sm:$0x3] %v266
  %314 = vst [vmem:[%s3 + $0x20] sm:$0x3] %v269
  %315 = vst.msk [vmem:[%s3 + $0x28] sm:$0x3] %vm177, %v272
  %316 = vst [vmem:[%s3 + $0x30] sm:$0xff] %v276
  %317 = vst [vmem:[%s3 + $0x38] sm:$0xff] %v279
  %318 = vst.msk [vmem:[%s3 + $0x40] sm:$0xff] %vm173, %v282
  %319 = vst [vmem:[%s3 + $0x48] sm:$0x3] %v275
  %320 = vst [vmem:[%s3 + $0x50] sm:$0x3] %v278
  %321 = vst.msk [vmem:[%s3 + $0x58] sm:$0x3] %vm177, %v281
  %322 = vst [vmem:[%s3 + $0x60] sm:$0xff] %v285
  %323 = vst [vmem:[%s3 + $0x68] sm:$0xff] %v288
  %324 = vst.msk [vmem:[%s3 + $0x70] sm:$0xff] %vm173, %v291
  %325 = vst [vmem:[%s3 + $0x78] sm:$0x3] %v284
  %326 = vst [vmem:[%s3 + $0x80] sm:$0x3] %v287
  %327 = vst.msk [vmem:[%s3 + $0x88] sm:$0x3] %vm177, %v290
  // Predicated region
  $region10: #{tpu_custom_call.1} parent=0 // pred_check
    _
  $region11: #{tpu_custom_call.1} parent=0 // pred_check_branch
    %329 = sbr.rel (0) target = $region13
  $region12: #{tpu_custom_call.1} parent=0 // pred_region
    _
  $region13: #{tpu_custom_call.1} parent=0 // pred_fallthru
    _
  // Predicated region
  $region14: #{tpu_custom_call.1} parent=0 // pred_check
    _
  $region15: #{tpu_custom_call.1} parent=0 // pred_check_branch
    %331 = sbr.rel (0) target = $region17
  $region16: #{tpu_custom_call.1} parent=0 // pred_region
    _
  $region17: #{tpu_custom_call.1} parent=0 // pred_fallthru
    _
  // Predicated region
  $region18: #{tpu_custom_call.1} parent=0 // pred_check
    _
  $region19: #{tpu_custom_call.1} parent=0 // pred_check_branch
    %333 = sbr.rel (0) target = $region21
  $region20: #{tpu_custom_call.1} parent=0 // pred_region
    _
  $region21: #{tpu_custom_call.1} parent=0 // pred_fallthru
    _
  // Predicated region
  $region22: #{tpu_custom_call.1} parent=0 // pred_check
    _
  $region23: #{tpu_custom_call.1} parent=0 // pred_check_branch
    %335 = sbr.rel (0) target = $region25
  $region24: #{tpu_custom_call.1} parent=0 // pred_region
    _
  $region25: #{tpu_custom_call.1} parent=0 // pred_fallthru
    _

// kernel: _median_pool_forward.1
$region0: #{_median_pool_forward.1}
  #allocation0 [shape = 'u32[]', space=smem, size = 0x4, offset = 0x4, fixed_abs, tag = 'smem constant byte address 0x4 - core index']
  #allocation1 [shape = 'u32[144,128]{1,0:T(1,128)}', space=vmem, size = 0x12000, scoped, tag = 'internal scratch']
  %s0 = inlined_call_operand.hbm [shape: f32[1,1,8,16,16], index: 0, kind: input, shape index: {}]
  %s1 = inlined_call_operand.vmem [shape: f32[1,8,14,14], index: 1, kind: output, shape index: {}]
  %s2 = sld [smem:[#allocation0]]
  $region41: #{_median_pool_forward.1} parent=0
    _
  %s4 = ssub.s32 1, %s2
  %s5 = scalar_select 0, %s4, %s2
  $region1: #{_median_pool_forward.1} parent=0
    #allocation2 [shape = 'u8[65536]{0}', space=vmem, size = 0x10000, scoped, tag = 'input window, operand 0']
    #allocation3 [shape = 's32[2]{0}', space=sflag, size = 0x8, scoped, tag = 'scoped memory for _median_pool_forward.1']
    %6 = vsyncpa [#allocation3], 0
    %s7 = scalar_lea.sflag [#allocation3], 1
    %8 = vsyncpa %s7, 0
    loop: start=0, step=1, limit=4
    $region2: #{_median_pool_forward.1} parent=1 // loop_pre_header
      _
    $region3: #{_median_pool_forward.1} parent=1 // loop_header
      %s10 = sphi 0, %s14
      %p11 = scmp.ge.s32.totalorder %s10, 4
      %s17 = sphi 0, %s29
      %s18 = sphi 0, %s25
      %s19 = sphi 0, %s17
      %s20 = sphi 0, %s18
      %s21 = sphi 0, %s19
      %s22 = sphi 0, %s20
      %s34 = sphi 0, %s36
      %s37 = sphi 0, %s34
      %s38 = sphi 0, %s37
      %s54 = sphi 0, %s38
      %s62 = sphi 0, %s64
      %s65 = sphi 0, %s62
      %s66 = sphi 0, %s65
      %s82 = sphi 0, %s66
    $region4: #{_median_pool_forward.1} parent=1 // loop_header_branch
      %13 = sbr.rel (%p11) target = $region8
    $region5: #{_median_pool_forward.1} parent=1 // loop_body
      %s15 = ssub.s32 %s10, 1
      %s16 = ssub.s32 %s10, 2
      %s23 = sadd.s32 1, %s18
      %p24 = scmp.ge.s32.totalorder %s23, 2
      %s25 = scalar_select %p24, 0, %s23
      %s26 = sadd.s32 1, %s17
      %s27 = scalar_select %p24, %s26, %s17
      %p28 = scmp.ge.s32.totalorder %s27, 1
      %s29 = scalar_select %p28, 0, %s27
      %s30 = ssub.s32 %s17, %s29
      %s31 = ssub.s32 %s18, %s25
      %s32 = sor.u32 %s30, %s31
      %p33 = scmp.eq.s32.totalorder %s32, 0
      %s35 = sadd.s32 %s34, 1
      %s36 = scalar_select %p33, %s34, %s35
      %p39 = pneg %p33
      %p40 = scmp.eq.s32.totalorder %s10, 1
      %p41 = por %p39, %p40
      %p42 = scmp.ne.s32.totalorder %s34, %s37
      %p43 = scmp.eq.s32.totalorder %s10, 0
      %p44 = por %p42, %p43
      %p45 = scmp.ne.s32.totalorder %s34, %s37
      %p46 = scmp.eq.s32.totalorder %s15, 1
      %p47 = por %p45, %p46
      %p48 = scmp.ne.s32.totalorder %s37, %s38
      %p49 = scmp.eq.s32.totalorder %s15, 0
      %p50 = por %p48, %p49
      %p51 = scmp.ne.s32.totalorder %s37, %s38
      %p52 = scmp.eq.s32.totalorder %s16, 1
      %p53 = por %p51, %p52
      %p55 = scmp.ne.s32.totalorder %s38, %s54
      %p56 = scmp.eq.s32.totalorder %s16, 0
      %p57 = por %p55, %p56
      %s58 = ssub.s32 %s17, %s29
      %s59 = ssub.s32 %s18, %s25
      %s60 = sor.u32 %s58, %s59
      %p61 = scmp.eq.s32.totalorder %s60, 0
      %s63 = sadd.s32 %s62, 1
      %s64 = scalar_select %p61, %s62, %s63
      %p67 = pneg %p61
      %p68 = scmp.eq.s32.totalorder %s10, 1
      %p69 = por %p67, %p68
      %p70 = scmp.ne.s32.totalorder %s62, %s65
      %p71 = scmp.eq.s32.totalorder %s10, 0
      %p72 = por %p70, %p71
      %p73 = scmp.ne.s32.totalorder %s62, %s65
      %p74 = scmp.eq.s32.totalorder %s15, 1
      %p75 = por %p73, %p74
      %p76 = scmp.ne.s32.totalorder %s65, %s66
      %p77 = scmp.eq.s32.totalorder %s15, 0
      %p78 = por %p76, %p77
      %p79 = scmp.ne.s32.totalorder %s65, %s66
      %p80 = scmp.eq.s32.totalorder %s16, 1
      %p81 = por %p79, %p80
      %p83 = scmp.ne.s32.totalorder %s66, %s82
      %p84 = scmp.eq.s32.totalorder %s16, 0
      %p85 = por %p83, %p84
      %p86 = scmp.le.s32.totalorder 1, %s10
      %p87 = scmp.lt.s32.totalorder %s10, 3
      %p88 = pnand %p86, %p87
      %p89 = pneg %p88
      // Predicated region
      $region9: #{_median_pool_forward.1} parent=5 // pred_check
        _
      $region10: #{_median_pool_forward.1} parent=5 // pred_check_branch
        %91 = sbr.rel (%p88) target = $region12
      $region11: #{_median_pool_forward.1} parent=5 // pred_region
        %s92 = ssub.s32 %s10, 1
      $region12: #{_median_pool_forward.1} parent=5 // pred_fallthru
        _
      %p93 = scmp.lt.s32.totalorder %s10, 2
      // Predicated region
      $region13: #{_median_pool_forward.1} parent=5 // pred_check
        %p94 = pneg %p93
      $region14: #{_median_pool_forward.1} parent=5 // pred_check_branch
        %96 = sbr.rel (%p94) target = $region16
      $region15: #{_median_pool_forward.1} parent=5 // pred_region
        // Predicated region
        $region17: #{_median_pool_forward.1} parent=15 // pred_check
          %p97 = pneg %p44
        $region18: #{_median_pool_forward.1} parent=15 // pred_check_branch
          %99 = sbr.rel (%p97) target = $region20
        $region19: #{_median_pool_forward.1} parent=15 // pred_region
          %s100 = sand.u32 %s34, 1
          %s101 = scalar_lea.sflag [#allocation3], %s100
          %s102 = sand.u32 %s34, 1
          %s103 = smul.addr %s102, 64
          %s104 = scalar_lea.vmem [#allocation2], %s103
          %s105 = smul.u32 4, %s18
          %s107 = ssub.s32 1024, 1024
          %108 = vsyncadd %s101, %s107
          %s109 = smul.addr %s105, 2
          %s110 = smul.addr %s17, 16
          %s111 = sadd.s32 %s109, %s110
          %s112 = smul.addr %s111, 128
          %s113 = scalar_lea.hbm %s0, %s112
          %s114 = sshll.u32 %s104, 4
          %s115 = int_to_ptr.vmem [resolvable:$true] %s114
          %120 = dma.hbm_to_vmem [thread:$0]  %s113, 1024, %s115, %s101, 128, 128, 8
        $region20: #{_median_pool_forward.1} parent=15 // pred_fallthru
          _
      $region16: #{_median_pool_forward.1} parent=5 // pred_fallthru
        _
      %p121 = scmp.le.s32.totalorder 1, %s10
      %p122 = scmp.lt.s32.totalorder %s10, 3
      %p123 = pnand %p121, %p122
      %p124 = pneg %p123
      // Predicated region
      $region21: #{_median_pool_forward.1} parent=5 // pred_check
        _
      $region22: #{_median_pool_forward.1} parent=5 // pred_check_branch
        %126 = sbr.rel (%p123) target = $region24
      $region23: #{_median_pool_forward.1} parent=5 // pred_region
        %s127 = ssub.s32 %s10, 1
        %s128 = sand.u32 %s37, 1
        %s129 = scalar_lea.sflag [#allocation3], %s128
        %s130 = sand.u32 %s37, 1
        %s131 = smul.addr %s130, 64
        %s132 = scalar_lea.vmem [#allocation2], %s131
        // Predicated region
        $region25: #{_median_pool_forward.1} parent=23 // pred_check
          %p133 = pneg %p50
        $region26: #{_median_pool_forward.1} parent=23 // pred_check_branch
          %135 = sbr.rel (%p133) target = $region28
        $region27: #{_median_pool_forward.1} parent=23 // pred_region
          %136 = dma.done %s129, 1024
        $region28: #{_median_pool_forward.1} parent=23 // pred_fallthru
          _
        %s137 = sand.u32 %s37, 1
        %s138 = scalar_lea.sflag [#allocation3], %s137
        %s139 = sand.u32 %s37, 1
        %s140 = smul.addr %s139, 64
        %s141 = scalar_lea.vmem [#allocation2], %s140
        %p142 = pneg %p50
        %p143 = pneg %p47
        %p144 = pneg %p78
        %p145 = pneg %p75
        %s146 = smul.u32 4, %s20
        %p147 = scmp.lt.s32.totalorder %s19, 0
        %s148 = scalar_select %p147, %s19, 0
        %p149 = scmp.lt.s32.totalorder %s146, 7
        %s150 = scalar_select %p149, %s146, 7
        %s151 = smul.addr %s150, 2
        %s152 = smul.addr %s148, 16
        %s153 = sadd.s32 %s151, %s152
        %s154 = smul.addr %s153, 8
        %s155 = scalar_lea.vmem %s1, %s154
        %s156 = smul.u32 4, %s20
        %s157 = smul.u32 4, %s20
        %p158 = scmp.lt.s32.totalorder %s19, 0
        %s159 = scalar_select %p158, %s19, 0
        %p160 = scmp.lt.s32.totalorder %s157, 7
        %s161 = scalar_select %p160, %s157, 7
        %s162 = smul.addr %s161, 2
        %s163 = smul.addr %s159, 16
        %s164 = sadd.s32 %s162, %s163
        %s165 = smul.addr %s164, 8
        %s166 = scalar_lea.vmem %s1, %s165
        %s167 = smul.u32 4, %s20
        %v168 = vld [vmem:[%s132] sm:$0xff]
        %v169 = vld [vmem:[%s132 + $0x8] sm:$0x3f]
        %v170 = vld [vmem:[%s132 + $0x10] sm:$0xff]
        %v171 = vld [vmem:[%s132 + $0x18] sm:$0x3f]
        %v172 = vld [vmem:[%s132 + $0x20] sm:$0xff]
        %v173 = vld [vmem:[%s132 + $0x28] sm:$0x3f]
        %v174 = vld [vmem:[%s132 + $0x30] sm:$0xff]
        %v175 = vld [vmem:[%s132 + $0x38] sm:$0x3f]
        %v176 = vld [vmem:[%s132 + $0x1] sm:$0xff]
        %v177 = vld [vmem:[%s132 + $0x9] sm:$0x3f]
        %v178 = vld [vmem:[%s132 + $0x11] sm:$0xff]
        %v179 = vld [vmem:[%s132 + $0x19] sm:$0x3f]
        %v180 = vld [vmem:[%s132 + $0x21] sm:$0xff]
        %v181 = vld [vmem:[%s132 + $0x29] sm:$0x3f]
        %v182 = vld [vmem:[%s132 + $0x31] sm:$0xff]
        %v183 = vld [vmem:[%s132 + $0x39] sm:$0x3f]
        %v184 = vld [vmem:[%s132 + $0x2] sm:$0xff]
        %v185 = vld [vmem:[%s132 + $0xa] sm:$0x3f]
        %v186 = vld [vmem:[%s132 + $0x12] sm:$0xff]
        %v187 = vld [vmem:[%s132 + $0x1a] sm:$0x3f]
        %v188 = vld [vmem:[%s132 + $0x22] sm:$0xff]
        %v189 = vld [vmem:[%s132 + $0x2a] sm:$0x3f]
        %v190 = vld [vmem:[%s132 + $0x32] sm:$0xff]
        %v191 = vld [vmem:[%s132 + $0x3a] sm:$0x3f]
        %v192 = vmin.f32 %v168, %v176
        %v193 = vmin.f32 %v169, %v177
        %v194 = vmin.f32 %v170, %v178
        %v195 = vmin.f32 %v171, %v179
        %v196 = vmin.f32 %v172, %v180
        %v197 = vmin.f32 %v173, %v181
        %v198 = vmin.f32 %v174, %v182
        %v199 = vmin.f32 %v175, %v183
        %v200 = vmax.f32 %v168, %v176
        %v201 = vmax.f32 %v169, %v177
        %v202 = vmax.f32 %v170, %v178
        %v203 = vmax.f32 %v171, %v179
        %v204 = vmax.f32 %v172, %v180
        %v205 = vmax.f32 %v173, %v181
        %v206 = vmax.f32 %v174, %v182
        %v207 = vmax.f32 %v175, %v183
        %v208 = vmin.f32 %v200, %v184
        %v209 = vmin.f32 %v201, %v185
        %v210 = vmin.f32 %v202, %v186
        %v211 = vmin.f32 %v203, %v187
        %v212 = vmin.f32 %v204, %v188
        %v213 = vmin.f32 %v205, %v189
        %v214 = vmin.f32 %v206, %v190
        %v215 = vmin.f32 %v207, %v191
        %v216 = vmax.f32 %v200, %v184
        %v217 = vmax.f32 %v201, %v185
        %v218 = vmax.f32 %v202, %v186
        %v219 = vmax.f32 %v203, %v187
        %v220 = vmax.f32 %v204, %v188
        %v221 = vmax.f32 %v205, %v189
        %v222 = vmax.f32 %v206, %v190
        %v223 = vmax.f32 %v207, %v191
        %v224 = vmin.f32 %v192, %v208
        %v225 = vmin.f32 %v193, %v209
        %v226 = vmin.f32 %v194, %v210
        %v227 = vmin.f32 %v195, %v211
        %v228 = vmin.f32 %v196, %v212
        %v229 = vmin.f32 %v197, %v213
        %v230 = vmin.f32 %v198, %v214
        %v231 = vmin.f32 %v199, %v215
        %v232 = vmax.f32 %v192, %v208
        %v233 = vmax.f32 %v193, %v209
        %v234 = vmax.f32 %v194, %v210
        %v235 = vmax.f32 %v195, %v211
        %v236 = vmax.f32 %v196, %v212
        %v237 = vmax.f32 %v197, %v213
        %v238 = vmax.f32 %v198, %v214
        %v239 = vmax.f32 %v199, %v215
        %248 = vrot.lane.b32.xlu0 %v224, 127
        %v249 = vpop.permute.xlu0 %248
        %250 = vrot.lane.b32.xlu0 %v225, 127
        %v251 = vpop.permute.xlu0 %250
        %252 = vrot.lane.b32.xlu0 %v226, 127
        %v253 = vpop.permute.xlu0 %252
        %254 = vrot.lane.b32.xlu0 %v227, 127
        %v255 = vpop.permute.xlu0 %254
        %256 = vrot.lane.b32.xlu0 %v228, 127
        %v257 = vpop.permute.xlu0 %256
        %258 = vrot.lane.b32.xlu0 %v229, 127
        %v259 = vpop.permute.xlu0 %258
        %260 = vrot.lane.b32.xlu0 %v230, 127
        %v261 = vpop.permute.xlu0 %260
        %262 = vrot.lane.b32.xlu0 %v231, 127
        %v263 = vpop.permute.xlu0 %262
        %v272 = vmax.f32 %v224, %v249
        %v273 = vmax.f32 %v225, %v251
        %v274 = vmax.f32 %v226, %v253
        %v275 = vmax.f32 %v227, %v255
        %v276 = vmax.f32 %v228, %v257
        %v277 = vmax.f32 %v229, %v259
        %v278 = vmax.f32 %v230, %v261
        %v279 = vmax.f32 %v231, %v263
        %288 = vrot.lane.b32.xlu0 %v272, 127
        %v289 = vpop.permute.xlu0 %288
        %290 = vrot.lane.b32.xlu0 %v273, 127
        %v291 = vpop.permute.xlu0 %290
        %292 = vrot.lane.b32.xlu0 %v274, 127
        %v293 = vpop.permute.xlu0 %292
        %294 = vrot.lane.b32.xlu0 %v275, 127
        %v295 = vpop.permute.xlu0 %294
        %296 = vrot.lane.b32.xlu0 %v276, 127
        %v297 = vpop.permute.xlu0 %296
        %298 = vrot.lane.b32.xlu0 %v277, 127
        %v299 = vpop.permute.xlu0 %298
        %300 = vrot.lane.b32.xlu0 %v278, 127
        %v301 = vpop.permute.xlu0 %300
        %302 = vrot.lane.b32.xlu0 %v279, 127
        %v303 = vpop.permute.xlu0 %302
        %v312 = vmax.f32 %v224, %v289
        %v313 = vmax.f32 %v225, %v291
        %v314 = vmax.f32 %v226, %v293
        %v315 = vmax.f32 %v227, %v295
        %v316 = vmax.f32 %v228, %v297
        %v317 = vmax.f32 %v229, %v299
        %v318 = vmax.f32 %v230, %v301
        %v319 = vmax.f32 %v231, %v303
        %328 = vrot.lane.b32.xlu0 %v232, 127
        %v329 = vpop.permute.xlu0 %328
        %330 = vrot.lane.b32.xlu0 %v233, 127
        %v331 = vpop.permute.xlu0 %330
        %332 = vrot.lane.b32.xlu0 %v234, 127
        %v333 = vpop.permute.xlu0 %332
        %334 = vrot.lane.b32.xlu0 %v235, 127
        %v335 = vpop.permute.xlu0 %334
        %336 = vrot.lane.b32.xlu0 %v236, 127
        %v337 = vpop.permute.xlu0 %336
        %338 = vrot.lane.b32.xlu0 %v237, 127
        %v339 = vpop.permute.xlu0 %338
        %340 = vrot.lane.b32.xlu0 %v238, 127
        %v341 = vpop.permute.xlu0 %340
        %342 = vrot.lane.b32.xlu0 %v239, 127
        %v343 = vpop.permute.xlu0 %342
        %v352 = vmin.f32 %v232, %v329
        %v353 = vmin.f32 %v233, %v331
        %v354 = vmin.f32 %v234, %v333
        %v355 = vmin.f32 %v235, %v335
        %v356 = vmin.f32 %v236, %v337
        %v357 = vmin.f32 %v237, %v339
        %v358 = vmin.f32 %v238, %v341
        %v359 = vmin.f32 %v239, %v343
        %v360 = vmax.f32 %v232, %v329
        %v361 = vmax.f32 %v233, %v331
        %v362 = vmax.f32 %v234, %v333
        %v363 = vmax.f32 %v235, %v335
        %v364 = vmax.f32 %v236, %v337
        %v365 = vmax.f32 %v237, %v339
        %v366 = vmax.f32 %v238, %v341
        %v367 = vmax.f32 %v239, %v343
        %368 = vrot.lane.b32.xlu0 %v232, 126
        %v369 = vpop.permute.xlu0 %368
        %370 = vrot.lane.b32.xlu0 %v233, 126
        %v371 = vpop.permute.xlu0 %370
        %372 = vrot.lane.b32.xlu0 %v234, 126
        %v373 = vpop.permute.xlu0 %372
        %374 = vrot.lane.b32.xlu0 %v235, 126
        %v375 = vpop.permute.xlu0 %374
        %376 = vrot.lane.b32.xlu0 %v236, 126
        %v377 = vpop.permute.xlu0 %376
        %378 = vrot.lane.b32.xlu0 %v237, 126
        %v379 = vpop.permute.xlu0 %378
        %380 = vrot.lane.b32.xlu0 %v238, 126
        %v381 = vpop.permute.xlu0 %380
        %382 = vrot.lane.b32.xlu0 %v239, 126
        %v383 = vpop.permute.xlu0 %382
        %v392 = vmin.f32 %v360, %v369
        %v393 = vmin.f32 %v361, %v371
        %v394 = vmin.f32 %v362, %v373
        %v395 = vmin.f32 %v363, %v375
        %v396 = vmin.f32 %v364, %v377
        %v397 = vmin.f32 %v365, %v379
        %v398 = vmin.f32 %v366, %v381
        %v399 = vmin.f32 %v367, %v383
        %v400 = vmax.f32 %v352, %v392
        %v401 = vmax.f32 %v353, %v393
        %v402 = vmax.f32 %v354, %v394
        %v403 = vmax.f32 %v355, %v395
        %v404 = vmax.f32 %v356, %v396
        %v405 = vmax.f32 %v357, %v397
        %v406 = vmax.f32 %v358, %v398
        %v407 = vmax.f32 %v359, %v399
        %416 = vrot.lane.b32.xlu0 %v216, 127
        %v417 = vpop.permute.xlu0 %416
        %418 = vrot.lane.b32.xlu0 %v217, 127
        %v419 = vpop.permute.xlu0 %418
        %420 = vrot.lane.b32.xlu0 %v218, 127
        %v421 = vpop.permute.xlu0 %420
        %422 = vrot.lane.b32.xlu0 %v219, 127
        %v423 = vpop.permute.xlu0 %422
        %424 = vrot.lane.b32.xlu0 %v220, 127
        %v425 = vpop.permute.xlu0 %424
        %426 = vrot.lane.b32.xlu0 %v221, 127
        %v427 = vpop.permute.xlu0 %426
        %428 = vrot.lane.b32.xlu0 %v222, 127
        %v429 = vpop.permute.xlu0 %428
        %430 = vrot.lane.b32.xlu0 %v223, 127
        %v431 = vpop.permute.xlu0 %430
        %v440 = vmin.f32 %v216, %v417
        %v441 = vmin.f32 %v217, %v419
        %v442 = vmin.f32 %v218, %v421
        %v443 = vmin.f32 %v219, %v423
        %v444 = vmin.f32 %v220, %v425
        %v445 = vmin.f32 %v221, %v427
        %v446 = vmin.f32 %v222, %v429
        %v447 = vmin.f32 %v223, %v431
        %456 = vrot.lane.b32.xlu0 %v440, 127
        %v457 = vpop.permute.xlu0 %456
        %458 = vrot.lane.b32.xlu0 %v441, 127
        %v459 = vpop.permute.xlu0 %458
        %460 = vrot.lane.b32.xlu0 %v442, 127
        %v461 = vpop.permute.xlu0 %460
        %462 = vrot.lane.b32.xlu0 %v443, 127
        %v463 = vpop.permute.xlu0 %462
        %464 = vrot.lane.b32.xlu0 %v444, 127
        %v465 = vpop.permute.xlu0 %464
        %466 = vrot.lane.b32.xlu0 %v445, 127
        %v467 = vpop.permute.xlu0 %466
        %468 = vrot.lane.b32.xlu0 %v446, 127
        %v469 = vpop.permute.xlu0 %468
        %470 = vrot.lane.b32.xlu0 %v447, 127
        %v471 = vpop.permute.xlu0 %470
        %v480 = vmin.f32 %v216, %v457
        %v481 = vmin.f32 %v217, %v459
        %v482 = vmin.f32 %v218, %v461
        %v483 = vmin.f32 %v219, %v463
        %v484 = vmin.f32 %v220, %v465
        %v485 = vmin.f32 %v221, %v467
        %v486 = vmin.f32 %v222, %v469
        %v487 = vmin.f32 %v223, %v471
        %v488 = vmin.f32 %v312, %v400
        %v489 = vmin.f32 %v313, %v401
        %v490 = vmin.f32 %v314, %v402
        %v491 = vmin.f32 %v315, %v403
        %v492 = vmin.f32 %v316, %v404
        %v493 = vmin.f32 %v317, %v405
        %v494 = vmin.f32 %v318, %v406
        %v495 = vmin.f32 %v319, %v407
        %v496 = vmax.f32 %v312, %v400
        %v497 = vmax.f32 %v313, %v401
        %v498 = vmax.f32 %v314, %v402
        %v499 = vmax.f32 %v315, %v403
        %v500 = vmax.f32 %v316, %v404
        %v501 = vmax.f32 %v317, %v405
        %v502 = vmax.f32 %v318, %v406
        %v503 = vmax.f32 %v319, %v407
        %v504 = vmin.f32 %v496, %v480
        %v505 = vmin.f32 %v497, %v481
        %v506 = vmin.f32 %v498, %v482
        %v507 = vmin.f32 %v499, %v483
        %v508 = vmin.f32 %v500, %v484
        %v509 = vmin.f32 %v501, %v485
        %v510 = vmin.f32 %v502, %v486
        %v511 = vmin.f32 %v503, %v487
        %v512 = vmax.f32 %v488, %v504
        %v513 = vmax.f32 %v489, %v505
        %v514 = vmax.f32 %v490, %v506
        %v515 = vmax.f32 %v491, %v507
        %v516 = vmax.f32 %v492, %v508
        %v517 = vmax.f32 %v493, %v509
        %v518 = vmax.f32 %v494, %v510
        %v519 = vmax.f32 %v495, %v511
        %vm520 = vcmask 113664
        %521 = vst.msk [vmem:[%s166] sm:$0xff] %vm520, %v512
        %vm522 = vcmask 111616
        %523 = vst.msk [vmem:[%s166 + $0x8] sm:$0x3f] %vm522, %v513
        %524 = vst.msk [vmem:[%s166 + $0x10] sm:$0xff] %vm520, %v514
        %525 = vst.msk [vmem:[%s166 + $0x18] sm:$0x3f] %vm522, %v515
        %526 = vst.msk [vmem:[%s166 + $0x20] sm:$0xff] %vm520, %v516
        %527 = vst.msk [vmem:[%s166 + $0x28] sm:$0x3f] %vm522, %v517
        %528 = vst.msk [vmem:[%s166 + $0x30] sm:$0xff] %vm520, %v518
        %529 = vst.msk [vmem:[%s166 + $0x38] sm:$0x3f] %vm522, %v519
        %s530 = smul.u32 4, %s20
        %p531 = scmp.lt.s32.totalorder %s19, 0
        %s532 = scalar_select %p531, %s19, 0
        %p533 = scmp.lt.s32.totalorder %s530, 7
        %s534 = scalar_select %p533, %s530, 7
        %s535 = smul.addr %s534, 2
        %s536 = smul.addr %s532, 16
        %s537 = sadd.s32 %s535, %s536
        %s538 = smul.addr %s537, 8
        %s539 = scalar_lea.vmem %s1, %s538
        // Predicated region
        $region29: #{_median_pool_forward.1} parent=23 // pred_check
          %p540 = pneg %p75
        $region30: #{_median_pool_forward.1} parent=23 // pred_check_branch
          %542 = sbr.rel (%p540) target = $region32
        $region31: #{_median_pool_forward.1} parent=23 // pred_region
          %s543 = smul.u32 4, %s20
        $region32: #{_median_pool_forward.1} parent=23 // pred_fallthru
          _
      $region24: #{_median_pool_forward.1} parent=5 // pred_fallthru
        _
      %p544 = scmp.le.s32.totalorder 2, %s10
      // Predicated region
      $region33: #{_median_pool_forward.1} parent=5 // pred_check
        %p545 = pneg %p544
      $region34: #{_median_pool_forward.1} parent=5 // pred_check_branch
        %547 = sbr.rel (%p545) target = $region36
      $region35: #{_median_pool_forward.1} parent=5 // pred_region
        %s548 = ssub.s32 %s10, 2
        // Predicated region
        $region37: #{_median_pool_forward.1} parent=35 // pred_check
          %p549 = pneg %p81
        $region38: #{_median_pool_forward.1} parent=35 // pred_check_branch
          %551 = sbr.rel (%p549) target = $region40
        $region39: #{_median_pool_forward.1} parent=35 // pred_region
          %s552 = smul.u32 4, %s22
          %p553 = scmp.lt.s32.totalorder %s21, 0
          %s554 = scalar_select %p553, %s21, 0
          %p555 = scmp.lt.s32.totalorder %s552, 7
          %s556 = scalar_select %p555, %s552, 7
          %s557 = smul.addr %s556, 2
          %s558 = smul.addr %s554, 16
          %s559 = sadd.s32 %s557, %s558
          %s560 = smul.addr %s559, 8
          %s561 = scalar_lea.vmem %s1, %s560
        $region40: #{_median_pool_forward.1} parent=35 // pred_fallthru
          _
      $region36: #{_median_pool_forward.1} parent=5 // pred_fallthru
        _
    $region6: #{_median_pool_forward.1} parent=1 // loop_footer
      %s14 = sadd.s32 1, %s10
    $region7: #{_median_pool_forward.1} parent=1 // loop_footer_branch
      %9 = sbr.rel target = $region3
    $region8: #{_median_pool_forward.1} parent=1 // loop_exit
      _
    %562 = vsyncpa [#allocation3], 1
    %s563 = scalar_lea.sflag [#allocation3], 1
    %564 = vsyncpa %s563, 1

</llo_original>
